<compile_context>
chip_gen: v7x
topology: tpu7x:2x2x1
jax: 0.10.0
libtpu: 0.0.40
codegen_flags: <defaults>
</compile_context>

<pallas_src>
import numpy as np
import jax
import jax.numpy as jnp
from jax.experimental import pallas as pl
from jax.experimental.pallas import tpu as pltpu


def maxmin_kernel(z_ref, o_ref):
    # z_ref / o_ref: [BN, 2, TS, Lt] VMEM blocks; the halves live on the
    # untiled size-2 axis, so these slices are tile-aligned and free.
    a = z_ref[:, 0, :, :]
    b = z_ref[:, 1, :, :]
    o_ref[:, 0, :, :] = jnp.maximum(a, b)
    o_ref[:, 1, :, :] = jnp.minimum(a, b)


def _choose_layout(N, G, L, itemsize, target_block_bytes):
    """Pick the [N, 2, S, Lt] view and the (BN, 2, TS, Lt) block.

    Returns (S, Lt, BN, TS, grid).
    """
    M = G * L  # flat length of one half, per batch element (contiguous in memory)

    # ---- Lane dim: a multiple-of-128 divisor of M (free re-factorization of
    #      the contiguous half), capped so 8 sublane rows fit the block budget.
    if M % 128 == 0:
        lane_cap = max(128, (target_block_bytes // (2 * 8 * itemsize)) // 128 * 128)
        Lt = min(M, lane_cap)
        Lt -= Lt % 128
        while M % Lt:
            Lt -= 128
        S = M // Lt
    else:
        # TODO(synk): no 128-multiple factorization of G*H*W exists; fall back to
        # the original (G, L) factorization (full-extent last dim, masked lanes).
        S, Lt = G, L

    # ---- Sublane tile TS over S (keeps wide-channel layers within VMEM budget).
    row_bytes = 2 * Lt * itemsize
    max_ts = max(1, target_block_bytes // row_bytes)
    if max_ts >= S or S <= 8:
        TS = S
    else:
        TS = (max_ts // 8) * 8
        t = TS
        while t >= 8 and S % t:      # prefer an exact divisor (no masked edge block)
            t -= 8
        if t >= 8:
            TS = t
        TS = max(TS, 8)
    grid_s = pl.cdiv(S, TS)

    # ---- Batch fusion: when a whole per-batch slab is small, fuse batches into
    #      one contiguous DMA and amortize per-grid-step overhead.
    BN = 1
    if grid_s == 1 and TS == S:
        slab = 2 * M * itemsize
        BN = max(1, min(N, target_block_bytes // max(slab, 1)))
        while N % BN:
            BN -= 1

    # ---- Guarantee >= 2 grid points where possible so both v7x TCs get work.
    if (N // BN) * grid_s == 1:
        if BN > 1:
            BN //= 2
            while N % BN:
                BN -= 1
        elif S > 8:
            TS = min(S, max(8, ((S // 2 + 7) // 8) * 8))
            grid_s = pl.cdiv(S, TS)

    grid = (N // BN, grid_s)
    return S, Lt, BN, TS, grid


def maxmin(z, axis=1, *, target_block_bytes=4 * 1024 * 1024, donate=False):
    """MaxMin activation. z: [N, C, *spatial]; returns same shape."""
    # TODO(synk): only the channel axis (axis=1, the module's default) is implemented.
    assert axis == 1, "only axis=1 is implemented"
    N, C = z.shape[0], z.shape[1]
    assert C % 2 == 0, "channel dim must be even"
    if z.size == 0:
        return z

    spatial = z.shape[2:]
    L = int(np.prod(spatial)) if spatial else 1
    G = C // 2
    itemsize = jnp.dtype(z.dtype).itemsize

    S, Lt, BN, TS, grid = _choose_layout(N, G, L, itemsize, target_block_bytes)

    # Free contiguous reshape: per batch element, the first half (a) occupies the
    # first G*L elements and the second half (b) the next G*L, so [N, 2, S, Lt]
    # exposes the split on a leading axis without any data movement.
    z4 = z.reshape(N, 2, S, Lt)

    block = (BN, 2, TS, Lt)
    block_bytes = BN * 2 * TS * Lt * itemsize
    # Double-buffered in + out = 4 live buffers; leave slack, stay under v7x's
    # 64 MiB physical VMEM per TensorCore.
    vmem_limit = int(min(48 * 1024 * 1024, max(16 * 1024 * 1024, 5 * block_bytes)))

    out = pl.pallas_call(
        maxmin_kernel,
        out_shape=jax.ShapeDtypeStruct((N, 2, S, Lt), z.dtype),
        grid=grid,
        in_specs=[pl.BlockSpec(block, lambda n, s: (n, 0, s, 0))],
        out_specs=pl.BlockSpec(block, lambda n, s: (n, 0, s, 0)),
        input_output_aliases=({0: 0} if donate else {}),
        compiler_params=pltpu.CompilerParams(
            dimension_semantics=("parallel", "parallel"),
            vmem_limit_bytes=vmem_limit),
    )(z4)
    return out.reshape(z.shape)


def maxmin_ref(z, axis=1):
    """Pure-JAX reference: literal transcription of the torch forward."""
    a, b = jnp.split(z, 2, axis=axis)
    return jnp.concatenate([jnp.maximum(a, b), jnp.minimum(a, b)], axis=axis)


if __name__ == "__main__":
    key = jax.random.PRNGKey(0)
    N, C, H, W = 2, 4, 16, 16
    z = jax.random.normal(key, (N, C, H, W), dtype=jnp.float32)

    out = jax.block_until_ready(maxmin(z))
    ref = maxmin_ref(z)
    assert out.shape == z.shape
    np.testing.assert_array_equal(np.asarray(out), np.asarray(ref))

    # Extra small checks: awkward spatial size (7x7 -> lane re-factorization
    # fallback) and bf16.
    for shape, dt in [((2, 6, 7, 7), jnp.float32), ((2, 4, 16, 16), jnp.bfloat16)]:
        zz = jax.random.normal(jax.random.PRNGKey(1), shape, dtype=dt)
        oo = jax.block_until_ready(maxmin(zz))
        rr = maxmin_ref(zz)
        np.testing.assert_array_equal(
            np.asarray(oo, dtype=np.float32), np.asarray(rr, dtype=np.float32))

    print("KERNEL_OK")
</pallas_src>

<mosaic_0001>
module attributes {stable_mosaic.version = 11 : i64} {
  func.func @maxmin_kernel(%arg0: i32, %arg1: i32, %arg2: memref<1x2x1x512xf32, #tpu.memory_space<vmem>>, %arg3: memref<1x2x1x512xf32, #tpu.memory_space<vmem>>) attributes {dimension_semantics = [#tpu.dimension_semantics<parallel>, #tpu.dimension_semantics<parallel>], iteration_bounds = array<i64: 2, 1>, scalar_prefetch = 0 : i64, scratch_operands = 0 : i64, tpu.core_type = #tpu.core_type<tc>, window_params = [{transform_indices = @transform_0, window_bounds = array<i64: 1, 2, 1, 512>}, {transform_indices = @transform_1, window_bounds = array<i64: 1, 2, 1, 512>}]} {
    %c0 = arith.constant 0 : index
    %c0_0 = arith.constant 0 : index
    %c0_1 = arith.constant 0 : index
    %c0_2 = arith.constant 0 : index
    %0 = vector.load %arg2[%c0, %c0_0, %c0_1, %c0_2] : memref<1x2x1x512xf32, #tpu.memory_space<vmem>>, vector<1x1x1x512xf32>
    %1 = vector.shape_cast %0 : vector<1x1x1x512xf32> to vector<1x1x512xf32>
    %c0_3 = arith.constant 0 : index
    %c1 = arith.constant 1 : index
    %c0_4 = arith.constant 0 : index
    %c0_5 = arith.constant 0 : index
    %2 = vector.load %arg2[%c0_3, %c1, %c0_4, %c0_5] : memref<1x2x1x512xf32, #tpu.memory_space<vmem>>, vector<1x1x1x512xf32>
    %3 = vector.shape_cast %2 : vector<1x1x1x512xf32> to vector<1x1x512xf32>
    %4 = arith.maximumf %1, %3 : vector<1x1x512xf32>
    %c0_6 = arith.constant 0 : index
    %c0_7 = arith.constant 0 : index
    %c0_8 = arith.constant 0 : index
    %c0_9 = arith.constant 0 : index
    %5 = vector.load %arg3[%c0_6, %c0_7, %c0_8, %c0_9] : memref<1x2x1x512xf32, #tpu.memory_space<vmem>>, vector<1x1x1x512xf32>
    %6 = vector.shape_cast %5 : vector<1x1x1x512xf32> to vector<1x1x512xf32>
    %7 = vector.shape_cast %4 : vector<1x1x512xf32> to vector<1x1x1x512xf32>
    tpu.vector_store %arg3[%c0_6, %c0_7, %c0_8, %c0_9], %7 {strides = array<i32>} : memref<1x2x1x512xf32, #tpu.memory_space<vmem>>, vector<1x1x1x512xf32>,
    %8 = arith.minimumf %1, %3 : vector<1x1x512xf32>
    %c0_10 = arith.constant 0 : index
    %c1_11 = arith.constant 1 : index
    %c0_12 = arith.constant 0 : index
    %c0_13 = arith.constant 0 : index
    %9 = vector.load %arg3[%c0_10, %c1_11, %c0_12, %c0_13] : memref<1x2x1x512xf32, #tpu.memory_space<vmem>>, vector<1x1x1x512xf32>
    %10 = vector.shape_cast %9 : vector<1x1x1x512xf32> to vector<1x1x512xf32>
    %11 = vector.shape_cast %8 : vector<1x1x512xf32> to vector<1x1x1x512xf32>
    tpu.vector_store %arg3[%c0_10, %c1_11, %c0_12, %c0_13], %11 {strides = array<i32>} : memref<1x2x1x512xf32, #tpu.memory_space<vmem>>, vector<1x1x1x512xf32>,
    return
  }
  func.func @transform_0(%arg0: i32, %arg1: i32) -> (i32, i32, i32, i32) {
    %c0_i32 = arith.constant 0 : i32
    %c0_i32_0 = arith.constant 0 : i32
    %c0_i32_1 = arith.constant 0 : i32
    return %arg0, %c0_i32, %arg1, %c0_i32_0 : i32, i32, i32, i32
  }
  func.func @transform_1(%arg0: i32, %arg1: i32) -> (i32, i32, i32, i32) {
    %c0_i32 = arith.constant 0 : i32
    %c0_i32_0 = arith.constant 0 : i32
    %c0_i32_1 = arith.constant 0 : i32
    return %arg0, %c0_i32, %arg1, %c0_i32_0 : i32, i32, i32, i32
  }
}

</mosaic_0001>

<llo_original>
// kernel: tpu_custom_call.1
$region0: #{tpu_custom_call.1}
  #allocation0 [shape = 'u32[]', space=smem, size = 0x4, offset = 0x4, fixed_abs, tag = 'smem constant byte address 0x4 - core index']
  #allocation1 [shape = 'u32[144,128]{1,0:T(1,128)}', space=vmem, size = 0x12000, scoped, tag = 'internal scratch']
  %s0 = inlined_call_operand.hbm [shape: f32[2,2,1,512], index: 0, kind: input, shape index: {}]
  %s1 = inlined_call_operand.hbm [shape: f32[2,2,1,512], index: 1, kind: output, shape index: {}]
  %s2 = sld [smem:[#allocation0]]
  $region41: #{tpu_custom_call.1} parent=0
    _
  %s4 = ssub.s32 1, %s2
  %s5 = scalar_select 0, %s4, %s2
  $region1: #{tpu_custom_call.1} parent=0
    #allocation2 [shape = 'u8[8192]{0}', space=vmem, size = 0x2000, scoped, tag = 'input window, operand 0']
    #allocation3 [shape = 's32[2]{0}', space=sflag, size = 0x8, scoped, tag = 'scoped memory for tpu_custom_call.1']
    #allocation4 [shape = 's32[2]{0}', space=sflag, size = 0x8, scoped, tag = 'scoped memory for tpu_custom_call.1']
    #allocation5 [shape = 'u8[8192]{0}', space=vmem, size = 0x2000, scoped, tag = 'output window, operand 0']
    %6 = vsyncpa [#allocation3], 0
    %s7 = scalar_lea.sflag [#allocation3], 1
    %8 = vsyncpa %s7, 0
    %9 = vsyncpa [#allocation4], 0
    %s10 = scalar_lea.sflag [#allocation4], 1
    %11 = vsyncpa %s10, 0
    loop: start=0, step=1, limit=4
    $region2: #{tpu_custom_call.1} parent=1 // loop_pre_header
      _
    $region3: #{tpu_custom_call.1} parent=1 // loop_header
      %s13 = sphi 0, %s17
      %p14 = scmp.ge.s32.totalorder %s13, 4
      %s20 = sphi 0, %s32
      %s21 = sphi 0, %s28
      %s22 = sphi 0, %s20
      %s23 = sphi 0, %s21
      %s24 = sphi 0, %s22
      %s25 = sphi 0, %s23
      %s37 = sphi 0, %s39
      %s40 = sphi 0, %s37
      %s41 = sphi 0, %s40
      %s57 = sphi 0, %s41
      %s65 = sphi 0, %s67
      %s68 = sphi 0, %s65
      %s69 = sphi 0, %s68
      %s85 = sphi 0, %s69
    $region4: #{tpu_custom_call.1} parent=1 // loop_header_branch
      %16 = sbr.rel (%p14) target = $region8
    $region5: #{tpu_custom_call.1} parent=1 // loop_body
      %s18 = ssub.s32 %s13, 1
      %s19 = ssub.s32 %s13, 2
      %s26 = sadd.s32 1, %s21
      %p27 = scmp.ge.s32.totalorder %s26, 1
      %s28 = scalar_select %p27, 0, %s26
      %s29 = sadd.s32 1, %s20
      %s30 = scalar_select %p27, %s29, %s20
      %p31 = scmp.ge.s32.totalorder %s30, 2
      %s32 = scalar_select %p31, 0, %s30
      %s33 = ssub.s32 %s20, %s32
      %s34 = ssub.s32 %s21, %s28
      %s35 = sor.u32 %s33, %s34
      %p36 = scmp.eq.s32.totalorder %s35, 0
      %s38 = sadd.s32 %s37, 1
      %s39 = scalar_select %p36, %s37, %s38
      %p42 = pneg %p36
      %p43 = scmp.eq.s32.totalorder %s13, 1
      %p44 = por %p42, %p43
      %p45 = scmp.ne.s32.totalorder %s37, %s40
      %p46 = scmp.eq.s32.totalorder %s13, 0
      %p47 = por %p45, %p46
      %p48 = scmp.ne.s32.totalorder %s37, %s40
      %p49 = scmp.eq.s32.totalorder %s18, 1
      %p50 = por %p48, %p49
      %p51 = scmp.ne.s32.totalorder %s40, %s41
      %p52 = scmp.eq.s32.totalorder %s18, 0
      %p53 = por %p51, %p52
      %p54 = scmp.ne.s32.totalorder %s40, %s41
      %p55 = scmp.eq.s32.totalorder %s19, 1
      %p56 = por %p54, %p55
      %p58 = scmp.ne.s32.totalorder %s41, %s57
      %p59 = scmp.eq.s32.totalorder %s19, 0
      %p60 = por %p58, %p59
      %s61 = ssub.s32 %s20, %s32
      %s62 = ssub.s32 %s21, %s28
      %s63 = sor.u32 %s61, %s62
      %p64 = scmp.eq.s32.totalorder %s63, 0
      %s66 = sadd.s32 %s65, 1
      %s67 = scalar_select %p64, %s65, %s66
      %p70 = pneg %p64
      %p71 = scmp.eq.s32.totalorder %s13, 1
      %p72 = por %p70, %p71
      %p73 = scmp.ne.s32.totalorder %s65, %s68
      %p74 = scmp.eq.s32.totalorder %s13, 0
      %p75 = por %p73, %p74
      %p76 = scmp.ne.s32.totalorder %s65, %s68
      %p77 = scmp.eq.s32.totalorder %s18, 1
      %p78 = por %p76, %p77
      %p79 = scmp.ne.s32.totalorder %s68, %s69
      %p80 = scmp.eq.s32.totalorder %s18, 0
      %p81 = por %p79, %p80
      %p82 = scmp.ne.s32.totalorder %s68, %s69
      %p83 = scmp.eq.s32.totalorder %s19, 1
      %p84 = por %p82, %p83
      %p86 = scmp.ne.s32.totalorder %s69, %s85
      %p87 = scmp.eq.s32.totalorder %s19, 0
      %p88 = por %p86, %p87
      %p89 = scmp.le.s32.totalorder 1, %s13
      %p90 = scmp.lt.s32.totalorder %s13, 3
      %p91 = pnand %p89, %p90
      %p92 = pneg %p91
      // Predicated region
      $region9: #{tpu_custom_call.1} parent=5 // pred_check
        _
      $region10: #{tpu_custom_call.1} parent=5 // pred_check_branch
        %94 = sbr.rel (%p91) target = $region12
      $region11: #{tpu_custom_call.1} parent=5 // pred_region
        %s95 = ssub.s32 %s13, 1
      $region12: #{tpu_custom_call.1} parent=5 // pred_fallthru
        _
      %p96 = scmp.lt.s32.totalorder %s13, 2
      // Predicated region
      $region13: #{tpu_custom_call.1} parent=5 // pred_check
        %p97 = pneg %p96
      $region14: #{tpu_custom_call.1} parent=5 // pred_check_branch
        %99 = sbr.rel (%p97) target = $region16
      $region15: #{tpu_custom_call.1} parent=5 // pred_region
        // Predicated region
        $region17: #{tpu_custom_call.1} parent=15 // pred_check
          %p100 = pneg %p47
        $region18: #{tpu_custom_call.1} parent=15 // pred_check_branch
          %102 = sbr.rel (%p100) target = $region20
        $region19: #{tpu_custom_call.1} parent=15 // pred_region
          %s103 = sand.u32 %s37, 1
          %s104 = scalar_lea.sflag [#allocation3], %s103
          %s105 = sand.u32 %s37, 1
          %s106 = smul.addr %s105, 8
          %s107 = scalar_lea.vmem [#allocation2], %s106
          %s109 = ssub.s32 128, 128
          %110 = vsyncadd %s104, %s109
          %s111 = smul.addr %s21, 4
          %s112 = smul.addr %s20, 8
          %s113 = sadd.s32 %s111, %s112
          %s114 = smul.addr %s113, 16
          %s115 = scalar_lea.hbm %s0, %s114
          %s116 = sshll.u32 %s107, 4
          %s117 = int_to_ptr.vmem [resolvable:$true] %s116
          %122 = dma.hbm_to_vmem [thread:$0]  %s115, 128, %s117, %s104, 64, 64, 4
        $region20: #{tpu_custom_call.1} parent=15 // pred_fallthru
          _
      $region16: #{tpu_custom_call.1} parent=5 // pred_fallthru
        _
      %p123 = scmp.le.s32.totalorder 1, %s13
      %p124 = scmp.lt.s32.totalorder %s13, 3
      %p125 = pnand %p123, %p124
      %p126 = pneg %p125
      // Predicated region
      $region21: #{tpu_custom_call.1} parent=5 // pred_check
        _
      $region22: #{tpu_custom_call.1} parent=5 // pred_check_branch
        %128 = sbr.rel (%p125) target = $region24
      $region23: #{tpu_custom_call.1} parent=5 // pred_region
        %s129 = ssub.s32 %s13, 1
        %s130 = sand.u32 %s40, 1
        %s131 = scalar_lea.sflag [#allocation3], %s130
        %s132 = sand.u32 %s40, 1
        %s133 = smul.addr %s132, 8
        %s134 = scalar_lea.vmem [#allocation2], %s133
        // Predicated region
        $region25: #{tpu_custom_call.1} parent=23 // pred_check
          %p135 = pneg %p53
        $region26: #{tpu_custom_call.1} parent=23 // pred_check_branch
          %137 = sbr.rel (%p135) target = $region28
        $region27: #{tpu_custom_call.1} parent=23 // pred_region
          %138 = dma.done %s131, 128
        $region28: #{tpu_custom_call.1} parent=23 // pred_fallthru
          _
        %s139 = sand.u32 %s40, 1
        %s140 = scalar_lea.sflag [#allocation3], %s139
        %s141 = sand.u32 %s40, 1
        %s142 = smul.addr %s141, 8
        %s143 = scalar_lea.vmem [#allocation2], %s142
        %p144 = pneg %p53
        %p145 = pneg %p50
        %p146 = pneg %p81
        %p147 = pneg %p78
        %s148 = sand.u32 %s68, 1
        %s149 = scalar_lea.sflag [#allocation4], %s148
        %s150 = sand.u32 %s68, 1
        %s151 = smul.addr %s150, 8
        %s152 = scalar_lea.vmem [#allocation5], %s151
        %v153 = vld [vmem:[%s134] sm:$0xf]
        %s154 = scalar_lea.vmem %s134, 4 [#allocation2]
        %v155 = vld [vmem:[%s154] sm:$0xf]
        %v156 = vmax.f32 %v153, %v155
        %v157 = vlaneseq
        %vm158 = vcmp.ge.s32.totalorder %v157, 0
        %vm159 = vcmp.lt.s32.totalorder %v157, 512
        %vm160 = vmand %vm158, %vm159
        %161 = vst.msk [vmem:[%s152] sm:$0xf] %vm160, %v156
        %v162 = vmin.f32 %v153, %v155
        %s163 = scalar_lea.vmem %s152, 4 [#allocation5]
        %164 = vst.msk [vmem:[%s163] sm:$0xf] %vm160, %v162
        %s165 = sand.u32 %s68, 1
        %s166 = scalar_lea.sflag [#allocation4], %s165
        %s167 = sand.u32 %s68, 1
        %s168 = smul.addr %s167, 8
        %s169 = scalar_lea.vmem [#allocation5], %s168
        // Predicated region
        $region29: #{tpu_custom_call.1} parent=23 // pred_check
          %p170 = pneg %p78
        $region30: #{tpu_custom_call.1} parent=23 // pred_check_branch
          %172 = sbr.rel (%p170) target = $region32
        $region31: #{tpu_custom_call.1} parent=23 // pred_region
          %s174 = ssub.s32 128, 128
          %175 = vsyncadd %s166, %s174
          %s176 = smul.addr %s23, 4
          %s177 = smul.addr %s22, 8
          %s178 = sadd.s32 %s176, %s177
          %s179 = smul.addr %s178, 16
          %s180 = scalar_lea.hbm %s1, %s179
          %s181 = sshll.u32 %s169, 4
          %s182 = int_to_ptr.vmem [resolvable:$true] %s181
          %187 = dma.vmem_to_hbm [thread:$0]  %s182, 128, %s180, %s166, 64, 64, 4
        $region32: #{tpu_custom_call.1} parent=23 // pred_fallthru
          _
      $region24: #{tpu_custom_call.1} parent=5 // pred_fallthru
        _
      %p188 = scmp.le.s32.totalorder 2, %s13
      // Predicated region
      $region33: #{tpu_custom_call.1} parent=5 // pred_check
        %p189 = pneg %p188
      $region34: #{tpu_custom_call.1} parent=5 // pred_check_branch
        %191 = sbr.rel (%p189) target = $region36
      $region35: #{tpu_custom_call.1} parent=5 // pred_region
        %s192 = ssub.s32 %s13, 2
        // Predicated region
        $region37: #{tpu_custom_call.1} parent=35 // pred_check
          %p193 = pneg %p84
        $region38: #{tpu_custom_call.1} parent=35 // pred_check_branch
          %195 = sbr.rel (%p193) target = $region40
        $region39: #{tpu_custom_call.1} parent=35 // pred_region
          %s196 = sand.u32 %s69, 1
          %s197 = scalar_lea.sflag [#allocation4], %s196
          %s198 = sand.u32 %s69, 1
          %s199 = smul.addr %s198, 8
          %s200 = scalar_lea.vmem [#allocation5], %s199
          %201 = dma.done %s197, 128
        $region40: #{tpu_custom_call.1} parent=35 // pred_fallthru
          _
      $region36: #{tpu_custom_call.1} parent=5 // pred_fallthru
        _
    $region6: #{tpu_custom_call.1} parent=1 // loop_footer
      %s17 = sadd.s32 1, %s13
    $region7: #{tpu_custom_call.1} parent=1 // loop_footer_branch
      %12 = sbr.rel target = $region3
    $region8: #{tpu_custom_call.1} parent=1 // loop_exit
      _
    %202 = vsyncpa [#allocation3], 1
    %s203 = scalar_lea.sflag [#allocation3], 1
    %204 = vsyncpa %s203, 1
    %205 = vsyncpa [#allocation4], 1
    %s206 = scalar_lea.sflag [#allocation4], 1
    %207 = vsyncpa %s206, 1

</llo_original>
